<compile_context>
chip_gen: v7x
topology: tpu7x:2x2x1
jax: 0.10.0
libtpu: 0.0.40
codegen_flags: <defaults>
</compile_context>

<pallas_src>
from functools import partial

import jax
import jax.numpy as jnp
from jax import lax
from jax.experimental import pallas as pl
from jax.experimental.pallas import tpu as pltpu


def kd_soft_ce_kernel(s_ref, t_ref, row_loss_ref, *, inv_tau, n_rows,
                      block_rows, mask_tail):
    """One (TM, C) tile of student/teacher logits -> (TM, 1) per-row soft-CE.

    s_ref, t_ref : (TM, C) VMEM refs (student / teacher logits, f32 or bf16)
    row_loss_ref : (TM, 1) VMEM ref (f32 per-row loss; padding rows zeroed)
    """
    s = s_ref[...].astype(jnp.float32) * inv_tau
    t = t_ref[...].astype(jnp.float32) * inv_tau

    # Teacher softmax pieces (numerically stable, reduced along lanes).
    t_max = jnp.max(t, axis=-1, keepdims=True)
    t_exp = jnp.exp(t - t_max)
    t_sum = jnp.sum(t_exp, axis=-1, keepdims=True)

    # Student log_softmax pieces.
    s_max = jnp.max(s, axis=-1, keepdims=True)
    s_shift = s - s_max
    s_lse = jnp.log(jnp.sum(jnp.exp(s_shift), axis=-1, keepdims=True))

    # per_row = sum(-softmax(t) * (s_shift - s_lse), -1)
    #         = s_lse - (1/t_sum) * sum(t_exp * s_shift, -1)
    # (uses sum(softmax)=1; avoids a (TM, C) divide -> only a per-row recip).
    inv_t_sum = pl.reciprocal(t_sum, approx=False)        # exact, (TM, 1) only
    per_row = s_lse - inv_t_sum * jnp.sum(t_exp * s_shift, axis=-1, keepdims=True)

    if mask_tail:
        row0 = pl.program_id(0) * block_rows
        rid = row0 + lax.broadcasted_iota(jnp.int32, per_row.shape, 0)
        per_row = jnp.where(rid < n_rows, per_row, 0.0)    # zero padding rows

    row_loss_ref[...] = per_row


def _choose_block_rows(n_rows, n_cols, itemsize):
    """Largest row tile keeping (2 inputs x 2 pipeline buffers) <= ~12 MiB."""
    budget = 12 * 1024 * 1024
    tm = 1024
    while tm > 8 and 4 * tm * n_cols * itemsize > budget:
        tm //= 2
    tm = max(tm, 8)
    if n_rows <= tm:
        return n_rows          # single tile; block dim == full dim is always legal
    return tm                  # power of two >= 8 -> sublane-aligned


def kd_soft_ce_loss(preds_S, preds_T, *, tau=1.0, loss_weight=1.0,
                    mult_tem_square=True, reduction="mean", block_rows=None):
    """Pallas wrapper. preds_S, preds_T: (N, C) float (f32 or bf16).

    Returns a scalar f32 loss for reduction in {'mean', 'sum'}, or the (N,)
    per-row losses for reduction in {'none', None}.
    """
    assert preds_S.shape == preds_T.shape and preds_S.ndim == 2
    assert reduction in (None, "none", "mean", "sum")
    N, C = preds_S.shape

    itemsize = max(jnp.dtype(preds_S.dtype).itemsize,
                   jnp.dtype(preds_T.dtype).itemsize)
    tm = _choose_block_rows(N, C, itemsize) if block_rows is None else block_rows
    grid = pl.cdiv(N, tm)
    mask_tail = (grid * tm) != N

    kernel = partial(
        kd_soft_ce_kernel,
        inv_tau=1.0 / float(tau),
        n_rows=N,
        block_rows=tm,
        mask_tail=mask_tail,
    )

    row_losses = pl.pallas_call(
        kernel,
        out_shape=jax.ShapeDtypeStruct((grid * tm, 1), jnp.float32),
        grid=(grid,),
        in_specs=[
            pl.BlockSpec((tm, C), lambda i: (i, 0)),
            pl.BlockSpec((tm, C), lambda i: (i, 0)),
        ],
        out_specs=pl.BlockSpec((tm, 1), lambda i: (i, 0)),
        compiler_params=pltpu.CompilerParams(
            dimension_semantics=("parallel",),
            vmem_limit_bytes=32 * 1024 * 1024,
        ),
    )(preds_S, preds_T)

    scale = float(loss_weight) * (float(tau) ** 2 if mult_tem_square else 1.0)

    # TODO(synk): sample-wise `weight` and `avg_factor` overrides from
    # weight_reduce_loss are not wired in (module defaults: weight=None,
    # avg_factor=None).
    if reduction in (None, "none"):
        return row_losses[:N, 0] * scale
    total = jnp.sum(row_losses)            # tail rows already zeroed in-kernel
    if reduction == "sum":
        return total * scale
    return total * (scale / N)             # 'mean'


def _reference(preds_S, preds_T, *, tau, loss_weight, mult_tem_square,
               reduction="mean"):
    """Pure-JAX reference for validation."""
    s = preds_S.astype(jnp.float32) / tau
    t = preds_T.astype(jnp.float32) / tau
    soft_label = jax.nn.softmax(t, axis=-1)
    per_row = jnp.sum(-soft_label * jax.nn.log_softmax(s, axis=-1), axis=-1)
    if reduction in (None, "none"):
        loss = loss_weight * per_row
    elif reduction == "sum":
        loss = loss_weight * jnp.sum(per_row)
    else:
        loss = loss_weight * jnp.mean(per_row)
    if mult_tem_square:
        loss = loss * tau ** 2
    return loss


if __name__ == "__main__":
    key = jax.random.PRNGKey(0)
    tau, loss_weight, mult_tem_square = 2.0, 1.0, True
    k_s, k_t, k_s2, k_t2 = jax.random.split(key, 4)

    # --- Test 1: small (N, C) f32, single-tile path, 'mean' + 'none' -------
    N, C = 8, 32
    preds_S = jax.random.normal(k_s, (N, C), dtype=jnp.float32)
    preds_T = jax.random.normal(k_t, (N, C), dtype=jnp.float32)

    loss = kd_soft_ce_loss(preds_S, preds_T, tau=tau, loss_weight=loss_weight,
                           mult_tem_square=mult_tem_square)
    loss = jax.block_until_ready(loss)
    ref = _reference(preds_S, preds_T, tau=tau, loss_weight=loss_weight,
                     mult_tem_square=mult_tem_square)
    assert jnp.allclose(loss, ref, rtol=1e-5, atol=1e-5), (loss, ref)

    loss_none = kd_soft_ce_loss(preds_S, preds_T, tau=tau,
                                loss_weight=loss_weight,
                                mult_tem_square=mult_tem_square,
                                reduction="none")
    loss_none = jax.block_until_ready(loss_none)
    ref_none = _reference(preds_S, preds_T, tau=tau, loss_weight=loss_weight,
                          mult_tem_square=mult_tem_square, reduction="none")
    assert jnp.allclose(loss_none, ref_none, rtol=1e-5, atol=1e-5)

    # --- Test 2: bf16 inputs, multi-tile grid with ragged tail -------------
    N2, C2 = 264, 256            # 3 tiles of 128 rows, last tile mostly padding
    preds_S2 = jax.random.normal(k_s2, (N2, C2), dtype=jnp.float32).astype(jnp.bfloat16)
    preds_T2 = jax.random.normal(k_t2, (N2, C2), dtype=jnp.float32).astype(jnp.bfloat16)

    loss2 = kd_soft_ce_loss(preds_S2, preds_T2, tau=tau, loss_weight=loss_weight,
                            mult_tem_square=mult_tem_square, block_rows=128)
    loss2 = jax.block_until_ready(loss2)
    ref2 = _reference(preds_S2, preds_T2, tau=tau, loss_weight=loss_weight,
                      mult_tem_square=mult_tem_square)
    assert jnp.allclose(loss2, ref2, rtol=1e-4, atol=1e-4), (loss2, ref2)

    print("KERNEL_OK")
</pallas_src>

<mosaic_0001>
module attributes {stable_mosaic.version = 11 : i64} {
  func.func @kd_soft_ce_kernel(%arg0: i32, %arg1: memref<8x32xf32, #tpu.memory_space<vmem>>, %arg2: memref<8x32xf32, #tpu.memory_space<vmem>>, %arg3: memref<8x1xf32, #tpu.memory_space<vmem>>) attributes {dimension_semantics = [#tpu.dimension_semantics<parallel>], iteration_bounds = array<i64: 1>, scalar_prefetch = 0 : i64, scratch_operands = 0 : i64, tpu.core_type = #tpu.core_type<tc>, window_params = [{transform_indices = @transform_0, window_bounds = array<i64: 8, 32>}, {transform_indices = @transform_1, window_bounds = array<i64: 8, 32>}, {transform_indices = @transform_2, window_bounds = array<i64: 8, 1>}]} {
    %c0 = arith.constant 0 : index
    %c0_0 = arith.constant 0 : index
    %0 = vector.load %arg1[%c0, %c0_0] : memref<8x32xf32, #tpu.memory_space<vmem>>, vector<8x32xf32>
    %cst = arith.constant 5.000000e-01 : f32
    %1 = vector.broadcast %cst : f32 to vector<8x32xf32>
    %2 = arith.mulf %0, %1 : vector<8x32xf32>
    %c0_1 = arith.constant 0 : index
    %c0_2 = arith.constant 0 : index
    %3 = vector.load %arg2[%c0_1, %c0_2] : memref<8x32xf32, #tpu.memory_space<vmem>>, vector<8x32xf32>
    %cst_3 = arith.constant 5.000000e-01 : f32
    %4 = vector.broadcast %cst_3 : f32 to vector<8x32xf32>
    %5 = arith.mulf %3, %4 : vector<8x32xf32>
    %cst_4 = arith.constant dense<0xFF800000> : vector<8xf32>
    %6 = vector.multi_reduction <maximumf>, %5, %cst_4 [1] : vector<8x32xf32> to vector<8xf32>
    %7 = vector.shape_cast %6 : vector<8xf32> to vector<8x1xf32>
    %8 = vector.broadcast %7 : vector<8x1xf32> to vector<8x32xf32>
    %9 = arith.subf %5, %8 : vector<8x32xf32>
    %10 = math.exp %9 : vector<8x32xf32>
    %cst_5 = arith.constant dense<0.000000e+00> : vector<8xf32>
    %11 = vector.multi_reduction <add>, %10, %cst_5 [1] : vector<8x32xf32> to vector<8xf32>
    %12 = vector.shape_cast %11 : vector<8xf32> to vector<8x1xf32>
    %cst_6 = arith.constant dense<0xFF800000> : vector<8xf32>
    %13 = vector.multi_reduction <maximumf>, %2, %cst_6 [1] : vector<8x32xf32> to vector<8xf32>
    %14 = vector.shape_cast %13 : vector<8xf32> to vector<8x1xf32>
    %15 = vector.broadcast %14 : vector<8x1xf32> to vector<8x32xf32>
    %16 = arith.subf %2, %15 : vector<8x32xf32>
    %17 = math.exp %16 : vector<8x32xf32>
    %cst_7 = arith.constant dense<0.000000e+00> : vector<8xf32>
    %18 = vector.multi_reduction <add>, %17, %cst_7 [1] : vector<8x32xf32> to vector<8xf32>
    %19 = vector.shape_cast %18 : vector<8xf32> to vector<8x1xf32>
    %20 = math.log %19 : vector<8x1xf32>
    %21 = tpu.reciprocal %12 : vector<8x1xf32> -> vector<8x1xf32>
    %22 = arith.mulf %10, %16 : vector<8x32xf32>
    %cst_8 = arith.constant dense<0.000000e+00> : vector<8xf32>
    %23 = vector.multi_reduction <add>, %22, %cst_8 [1] : vector<8x32xf32> to vector<8xf32>
    %24 = vector.shape_cast %23 : vector<8xf32> to vector<8x1xf32>
    %25 = arith.mulf %21, %24 : vector<8x1xf32>
    %26 = arith.subf %20, %25 : vector<8x1xf32>
    %c0_9 = arith.constant 0 : index
    %c0_10 = arith.constant 0 : index
    %27 = vector.load %arg3[%c0_9, %c0_10] : memref<8x1xf32, #tpu.memory_space<vmem>>, vector<8x1xf32>
    tpu.vector_store %arg3[%c0_9, %c0_10], %26 {strides = array<i32>} : memref<8x1xf32, #tpu.memory_space<vmem>>, vector<8x1xf32>,
    return
  }
  func.func @transform_0(%arg0: i32) -> (i32, i32) {
    %c0_i32 = arith.constant 0 : i32
    %c0_i32_0 = arith.constant 0 : i32
    return %arg0, %c0_i32 : i32, i32
  }
  func.func @transform_1(%arg0: i32) -> (i32, i32) {
    %c0_i32 = arith.constant 0 : i32
    %c0_i32_0 = arith.constant 0 : i32
    return %arg0, %c0_i32 : i32, i32
  }
  func.func @transform_2(%arg0: i32) -> (i32, i32) {
    %c0_i32 = arith.constant 0 : i32
    %c0_i32_0 = arith.constant 0 : i32
    return %arg0, %c0_i32 : i32, i32
  }
}

</mosaic_0001>

<llo_original>
// kernel: tpu_custom_call.1
$region0: #{tpu_custom_call.1}
  #allocation0 [shape = 'u32[]', space=smem, size = 0x4, offset = 0x4, fixed_abs, tag = 'smem constant byte address 0x4 - core index']
  #allocation1 [shape = 'u32[144,128]{1,0:T(1,128)}', space=vmem, size = 0x12000, scoped, tag = 'internal scratch']
  %s0 = inlined_call_operand.hbm [shape: f32[8,32], index: 0, kind: input, shape index: {}]
  %s1 = inlined_call_operand.hbm [shape: f32[8,32], index: 1, kind: input, shape index: {}]
  %s2 = inlined_call_operand.vmem [shape: f32[8,1], index: 2, kind: output, shape index: {}]
  %s3 = sld [smem:[#allocation0]]
  $region26: #{tpu_custom_call.1} parent=0
    _
  %s5 = ssub.s32 1, %s3
  %s6 = scalar_select 0, %s5, %s3
  $region1: #{tpu_custom_call.1} parent=0
    #allocation2 [shape = 'u8[4096]{0}', space=vmem, size = 0x1000, scoped, tag = 'input window, operand 0, single buffered']
    #allocation3 [shape = 's32[1]{0}', space=sflag, size = 0x4, scoped, tag = 'scoped memory for tpu_custom_call.1']
    #allocation4 [shape = 'u8[4096]{0}', space=vmem, size = 0x1000, scoped, tag = 'input window, operand 1, single buffered']
    #allocation5 [shape = 's32[1]{0}', space=sflag, size = 0x4, scoped, tag = 'scoped memory for tpu_custom_call.1']
    %7 = vsyncpa [#allocation3], 0
    %8 = vsyncpa [#allocation5], 0
    // Predicated region
    $region2: #{tpu_custom_call.1} parent=1 // pred_check
      _
    $region3: #{tpu_custom_call.1} parent=1 // pred_check_branch
      %10 = sbr.rel (0) target = $region5
    $region4: #{tpu_custom_call.1} parent=1 // pred_region
      %s12 = ssub.s32 128, 128
      %13 = vsyncadd [#allocation3], %s12
      %s15 = sshll.u32 [#allocation2], 4
      %s16 = int_to_ptr.vmem [resolvable:$true] %s15
      %18 = dma.hbm_to_vmem [thread:$0]  %s0, 128, %s16, [#allocation3]
    $region5: #{tpu_custom_call.1} parent=1 // pred_fallthru
      _
    // Predicated region
    $region6: #{tpu_custom_call.1} parent=1 // pred_check
      _
    $region7: #{tpu_custom_call.1} parent=1 // pred_check_branch
      %20 = sbr.rel (0) target = $region9
    $region8: #{tpu_custom_call.1} parent=1 // pred_region
      %s22 = ssub.s32 128, 128
      %23 = vsyncadd [#allocation5], %s22
      %s25 = sshll.u32 [#allocation4], 4
      %s26 = int_to_ptr.vmem [resolvable:$true] %s25
      %28 = dma.hbm_to_vmem [thread:$0]  %s1, 128, %s26, [#allocation5]
    $region9: #{tpu_custom_call.1} parent=1 // pred_fallthru
      _
    // Predicated region
    $region10: #{tpu_custom_call.1} parent=1 // pred_check
      _
    $region11: #{tpu_custom_call.1} parent=1 // pred_check_branch
      %30 = sbr.rel (0) target = $region13
    $region12: #{tpu_custom_call.1} parent=1 // pred_region
      %31 = dma.done [#allocation3], 128
    $region13: #{tpu_custom_call.1} parent=1 // pred_fallthru
      _
    // Predicated region
    $region14: #{tpu_custom_call.1} parent=1 // pred_check
      _
    $region15: #{tpu_custom_call.1} parent=1 // pred_check_branch
      %33 = sbr.rel (0) target = $region17
    $region16: #{tpu_custom_call.1} parent=1 // pred_region
      %34 = dma.done [#allocation5], 128
    $region17: #{tpu_custom_call.1} parent=1 // pred_fallthru
      _
    %v35 = vld [vmem:[#allocation2] sm:$0xff]
    %v36 = vmul.f32 %v35, 0.5
    %v37 = vld [vmem:[#allocation4] sm:$0xff]
    %v38 = vmul.f32 %v37, 0.5
    %vm39 = vcmask 261120
    %v40 = vsel %vm39, %v38, -inf
    %41 = vmax.xlane.f32.xlu0 %v40
    %v42 = vpop.xlane.xlu0 %41
    %v43 = vsub.f32 %v38, %v42
    %v44 = vmul.f32 %v43, 1.442695
    %v45 = vpow.pop %v44
    %v46 = vsel %vm39, %v45, 0.0
    %47 = vadd.xlane.f32.xlu0 %v46
    %v48 = vpop.xlane.xlu0 %47
    %v49 = vsel %vm39, %v36, -inf
    %50 = vmax.xlane.f32.xlu0 %v49
    %v51 = vpop.xlane.xlu0 %50
    %v52 = vsub.f32 %v36, %v51
    %v53 = vmul.f32 %v52, 1.442695
    %v54 = vpow.pop %v53
    %v55 = vsel %vm39, %v54, 0.0
    %56 = vadd.xlane.f32.xlu0 %v55
    %v57 = vpop.xlane.xlu0 %56
    %v58 = vlog2.pop %v57
    %v59 = vmul.f32 %v58, 0.6931472
    %v60 = vrcp.pop %v48
    %v61 = vmul.f32 %v45, %v52
    %v62 = vsel %vm39, %v61, 0.0
    %63 = vadd.xlane.f32.xlu0 %v62
    %v64 = vpop.xlane.xlu0 %63
    %v65 = vmul.f32 %v60, %v64
    %v66 = vsub.f32 %v59, %v65
    %vm67 = vcmask 7168
    %68 = vst.msk [vmem:[%s2] sm:$0xff] %vm67, %v66
    // Predicated region
    $region18: #{tpu_custom_call.1} parent=1 // pred_check
      _
    $region19: #{tpu_custom_call.1} parent=1 // pred_check_branch
      %70 = sbr.rel (0) target = $region21
    $region20: #{tpu_custom_call.1} parent=1 // pred_region
      _
    $region21: #{tpu_custom_call.1} parent=1 // pred_fallthru
      _
    // Predicated region
    $region22: #{tpu_custom_call.1} parent=1 // pred_check
      _
    $region23: #{tpu_custom_call.1} parent=1 // pred_check_branch
      %72 = sbr.rel (0) target = $region25
    $region24: #{tpu_custom_call.1} parent=1 // pred_region
      _
    $region25: #{tpu_custom_call.1} parent=1 // pred_fallthru
      _
    %73 = vsyncpa [#allocation3], 1
    %74 = vsyncpa [#allocation5], 1

</llo_original>
